<compile_context>
chip_gen: v7x
topology: tpu7x:2x2x1
jax: 0.10.0
libtpu: 0.0.40
codegen_flags: <defaults>
</compile_context>

<pallas_src>
import functools

import jax
import jax.numpy as jnp
from jax.experimental import pallas as pl
from jax.experimental.pallas import tpu as pltpu

_LANE = 128
_MIN_BLOCK_BYTES = 512 * 1024          # never go below this per-input block
_MAX_BLOCK_BYTES = 8 * 1024 * 1024     # plateau of the measured tile sweep
_DEFAULT_VMEM_CAPACITY = 64 << 20      # conservative (v7x per-TC) fallback
_SMALL_INPUT_BYTES = 256 << 10         # below this, plain XLA add wins


@functools.lru_cache(maxsize=None)
def _vmem_capacity_bytes() -> int:
    """Per-core VMEM capacity, with a conservative fallback."""
    try:
        return int(pltpu.get_tpu_info().vmem_capacity_bytes)
    except Exception:  # query unavailable -> assume smallest VMEM (v7x)
        return _DEFAULT_VMEM_CAPACITY


def _add_kernel(x1_ref, x2_ref, o_ref):
    # Whole-tile elementwise add on the VPU (DMA is the only bottleneck).
    o_ref[...] = x1_ref[...] + x2_ref[...]


def _add_2d(x1_2d: jax.Array, x2_2d: jax.Array, tile_rows: int,
            vmem_limit_bytes: int) -> jax.Array:
    rows, cols = x1_2d.shape
    grid = (pl.cdiv(rows, tile_rows),)
    return pl.pallas_call(
        _add_kernel,
        out_shape=jax.ShapeDtypeStruct((rows, cols), x1_2d.dtype),
        grid_spec=pltpu.PrefetchScalarGridSpec(
            num_scalar_prefetch=0,
            grid=grid,
            in_specs=[
                pl.BlockSpec((tile_rows, cols), lambda i: (i, 0)),
                pl.BlockSpec((tile_rows, cols), lambda i: (i, 0)),
            ],
            out_specs=pl.BlockSpec((tile_rows, cols), lambda i: (i, 0)),
        ),
        compiler_params=pltpu.CompilerParams(
            # Shards the row axis across TensorCores on v7x; neutral elsewhere.
            dimension_semantics=("parallel",),
            vmem_limit_bytes=vmem_limit_bytes,
        ),
    )(x1_2d, x2_2d)


def add(x1: jax.Array, x2: jax.Array, *,
        small_input_bytes: int = _SMALL_INPUT_BYTES,
        block_bytes: int | None = None) -> jax.Array:
    """Elementwise add, matching torch's `x1 + x2` for same-shape inputs."""
    assert x1.shape == x2.shape, "broadcasting not needed for this module's use"
    assert x1.dtype == x2.dtype
    orig_shape = x1.shape
    n = x1.size
    itemsize = jnp.dtype(x1.dtype).itemsize

    # Tiny / empty tensors: custom-call launch + pipeline prologue dominate;
    # XLA's fused elementwise add is strictly better here.
    if n == 0 or n * itemsize < small_input_bytes:
        return x1 + x2

    # Packed sublane multiple: 8 for 4-byte, 16 for bf16, 32 for 1-byte dtypes.
    sublane_mult = 8 * max(1, 4 // itemsize)

    # Lane-dense [rows, 128] slab. Padding is only needed when the total size
    # is not a multiple of 128 (granule = one lane row); ragged *row* counts
    # are handled for free by the cdiv grid + masked last block.
    x1_flat = x1.reshape(-1)
    x2_flat = x2.reshape(-1)
    rem = n % _LANE
    n_pad = n if rem == 0 else n + (_LANE - rem)
    if n_pad != n:
        # TODO(synk): a <128-element tail could instead be split off and added
        # with plain XLA to avoid materializing padded copies of both inputs.
        pad = n_pad - n
        x1_flat = jnp.pad(x1_flat, (0, pad))
        x2_flat = jnp.pad(x2_flat, (0, pad))

    rows = n_pad // _LANE
    x1_2d = x1_flat.reshape(rows, _LANE)
    x2_2d = x2_flat.reshape(rows, _LANE)

    # Generation-aware block size: ~1/16 of per-core VMEM per input block
    # (8 MiB on 128 MiB v5e/v6e, 4 MiB on 64 MiB v7x). With 3 arrays x
    # double-buffering that is ~3/8 of VMEM; vmem_limit raised to match.
    vmem_capacity = _vmem_capacity_bytes()
    if block_bytes is None:
        block_bytes = min(_MAX_BLOCK_BYTES,
                          max(_MIN_BLOCK_BYTES, vmem_capacity // 16))
    vmem_limit = min(vmem_capacity // 2, max(32 << 20, 8 * block_bytes))

    target_rows = max(sublane_mult, block_bytes // (_LANE * itemsize))
    target_rows = (target_rows // sublane_mult) * sublane_mult

    if rows <= target_rows:
        # Single block equal to the full array: always a legal block shape.
        tile_rows = rows
    else:
        # Guarantee >=2 grid steps so both v7x TensorCores get work on
        # mid-size inputs (one extra ~0.35us step on single-TC v5e/v6e).
        half_rows = (rows + 1) // 2
        half_rows = ((half_rows + sublane_mult - 1) // sublane_mult) * sublane_mult
        tile_rows = min(target_rows, half_rows)

    out_2d = _add_2d(x1_2d, x2_2d, tile_rows, vmem_limit)

    out_flat = out_2d.reshape(-1)
    if n_pad != n:
        out_flat = out_flat[:n]
    return out_flat.reshape(orig_shape)


if __name__ == "__main__":
    key = jax.random.PRNGKey(0)
    k1, k2 = jax.random.split(key)

    # Small NCHW feature map consistent with the module's typical use.
    shape = (2, 4, 16, 16)
    x1 = jax.random.normal(k1, shape, dtype=jnp.float32)
    x2 = jax.random.normal(k2, shape, dtype=jnp.float32)
    expected = x1 + x2

    # Default path: tiny input takes the XLA bailout (fastest at this size).
    out_default = add(x1, x2)
    jax.block_until_ready(out_default)
    assert out_default.shape == expected.shape
    assert jnp.allclose(out_default, expected, atol=1e-6, rtol=1e-6)

    # Force the Pallas kernel on the same small shape to validate it end-to-end.
    out_pallas = add(x1, x2, small_input_bytes=0)
    jax.block_until_ready(out_pallas)
    assert jnp.allclose(out_pallas, expected, atol=1e-6, rtol=1e-6)

    # Ragged total size (not a multiple of 128): exercises the 128-element pad
    # granule plus a multi-step masked grid via a small block override.
    big_shape = (3, 5, 37, 129)
    b1 = jax.random.normal(k1, big_shape, dtype=jnp.float32)
    b2 = jax.random.normal(k2, big_shape, dtype=jnp.float32)
    big_out = add(b1, b2, small_input_bytes=0, block_bytes=64 * 1024)
    jax.block_until_ready(big_out)
    assert big_out.shape == big_shape
    assert jnp.allclose(big_out, b1 + b2, atol=1e-6, rtol=1e-6)

    # Aligned size that takes the Pallas path under default settings
    # (512 KiB per input, multiple of 128 elements -> no pad, no slice).
    al_shape = (8, 64, 16, 16)
    a1 = jax.random.normal(k1, al_shape, dtype=jnp.float32)
    a2 = jax.random.normal(k2, al_shape, dtype=jnp.float32)
    al_out = add(a1, a2)
    jax.block_until_ready(al_out)
    assert jnp.allclose(al_out, a1 + a2, atol=1e-6, rtol=1e-6)

    # bf16 coverage (sublane packing multiple of 16 rows).
    h_shape = (4, 8, 32, 32)
    h1 = jax.random.normal(k1, h_shape, dtype=jnp.bfloat16)
    h2 = jax.random.normal(k2, h_shape, dtype=jnp.bfloat16)
    h_out = add(h1, h2, small_input_bytes=0)
    jax.block_until_ready(h_out)
    assert jnp.allclose(h_out.astype(jnp.float32),
                        (h1 + h2).astype(jnp.float32), atol=1e-2, rtol=1e-2)

    print("KERNEL_OK")
</pallas_src>

<mosaic_0001>
module attributes {stable_mosaic.version = 11 : i64} {
  func.func @_add_kernel(%arg0: i32, %arg1: memref<16x128xf32, #tpu.memory_space<vmem>>, %arg2: memref<16x128xf32, #tpu.memory_space<vmem>>, %arg3: memref<16x128xf32, #tpu.memory_space<vmem>>) attributes {dimension_semantics = [#tpu.dimension_semantics<parallel>], iteration_bounds = array<i64: 1>, scalar_prefetch = 0 : i64, scratch_operands = 0 : i64, tpu.core_type = #tpu.core_type<tc>, window_params = [{transform_indices = @transform_0, window_bounds = array<i64: 16, 128>}, {transform_indices = @transform_1, window_bounds = array<i64: 16, 128>}, {transform_indices = @transform_2, window_bounds = array<i64: 16, 128>}]} {
    %c0 = arith.constant 0 : index
    %c0_0 = arith.constant 0 : index
    %0 = vector.load %arg1[%c0, %c0_0] : memref<16x128xf32, #tpu.memory_space<vmem>>, vector<16x128xf32>
    %c0_1 = arith.constant 0 : index
    %c0_2 = arith.constant 0 : index
    %1 = vector.load %arg2[%c0_1, %c0_2] : memref<16x128xf32, #tpu.memory_space<vmem>>, vector<16x128xf32>
    %2 = arith.addf %0, %1 : vector<16x128xf32>
    %c0_3 = arith.constant 0 : index
    %c0_4 = arith.constant 0 : index
    %3 = vector.load %arg3[%c0_3, %c0_4] : memref<16x128xf32, #tpu.memory_space<vmem>>, vector<16x128xf32>
    tpu.vector_store %arg3[%c0_3, %c0_4], %2 {strides = array<i32>} : memref<16x128xf32, #tpu.memory_space<vmem>>, vector<16x128xf32>,
    return
  }
  func.func @transform_0(%arg0: i32) -> (i32, i32) {
    %c0_i32 = arith.constant 0 : i32
    %c0_i32_0 = arith.constant 0 : i32
    return %arg0, %c0_i32 : i32, i32
  }
  func.func @transform_1(%arg0: i32) -> (i32, i32) {
    %c0_i32 = arith.constant 0 : i32
    %c0_i32_0 = arith.constant 0 : i32
    return %arg0, %c0_i32 : i32, i32
  }
  func.func @transform_2(%arg0: i32) -> (i32, i32) {
    %c0_i32 = arith.constant 0 : i32
    %c0_i32_0 = arith.constant 0 : i32
    return %arg0, %c0_i32 : i32, i32
  }
}

</mosaic_0001>

<llo_original>
// kernel: tpu_custom_call.1
$region0: #{tpu_custom_call.1}
  #allocation0 [shape = 'u32[]', space=smem, size = 0x4, offset = 0x4, fixed_abs, tag = 'smem constant byte address 0x4 - core index']
  #allocation1 [shape = 'u32[144,128]{1,0:T(1,128)}', space=vmem, size = 0x12000, scoped, tag = 'internal scratch']
  %s0 = inlined_call_operand.hbm [shape: f32[16,128], index: 0, kind: input, shape index: {}]
  %s1 = inlined_call_operand.hbm [shape: f32[16,128], index: 1, kind: input, shape index: {}]
  %s2 = inlined_call_operand.hbm [shape: f32[16,128], index: 2, kind: output, shape index: {}]
  %s3 = sld [smem:[#allocation0]]
  $region26: #{tpu_custom_call.1} parent=0
    _
  %s5 = ssub.s32 1, %s3
  %s6 = scalar_select 0, %s5, %s3
  $region1: #{tpu_custom_call.1} parent=0
    #allocation2 [shape = 'u8[8192]{0}', space=vmem, size = 0x2000, scoped, tag = 'input window, operand 0, single buffered']
    #allocation3 [shape = 's32[1]{0}', space=sflag, size = 0x4, scoped, tag = 'scoped memory for tpu_custom_call.1']
    #allocation4 [shape = 's32[1]{0}', space=sflag, size = 0x4, scoped, tag = 'scoped memory for tpu_custom_call.1']
    #allocation5 [shape = 'u8[8192]{0}', space=vmem, size = 0x2000, scoped, tag = 'input window, operand 1, single buffered']
    #allocation6 [shape = 's32[1]{0}', space=sflag, size = 0x4, scoped, tag = 'scoped memory for tpu_custom_call.1']
    #allocation7 [shape = 'u8[8192]{0}', space=vmem, size = 0x2000, scoped, tag = 'output window, operand 0, single buffered']
    %7 = vsyncpa [#allocation3], 0
    %8 = vsyncpa [#allocation6], 0
    %9 = vsyncpa [#allocation4], 0
    // Predicated region
    $region2: #{tpu_custom_call.1} parent=1 // pred_check
      _
    $region3: #{tpu_custom_call.1} parent=1 // pred_check_branch
      %11 = sbr.rel (0) target = $region5
    $region4: #{tpu_custom_call.1} parent=1 // pred_region
      %s13 = ssub.s32 256, 256
      %14 = vsyncadd [#allocation3], %s13
      %s15 = sshll.u32 [#allocation2], 4
      %s16 = int_to_ptr.vmem [resolvable:$true] %s15
      %21 = dma.hbm_to_vmem [thread:$0]  %s0, 256, %s16, [#allocation3], 128, 128, 8
    $region5: #{tpu_custom_call.1} parent=1 // pred_fallthru
      _
    // Predicated region
    $region6: #{tpu_custom_call.1} parent=1 // pred_check
      _
    $region7: #{tpu_custom_call.1} parent=1 // pred_check_branch
      %23 = sbr.rel (0) target = $region9
    $region8: #{tpu_custom_call.1} parent=1 // pred_region
      %s25 = ssub.s32 256, 256
      %26 = vsyncadd [#allocation6], %s25
      %s27 = sshll.u32 [#allocation5], 4
      %s28 = int_to_ptr.vmem [resolvable:$true] %s27
      %33 = dma.hbm_to_vmem [thread:$0]  %s1, 256, %s28, [#allocation6], 128, 128, 8
    $region9: #{tpu_custom_call.1} parent=1 // pred_fallthru
      _
    // Predicated region
    $region10: #{tpu_custom_call.1} parent=1 // pred_check
      _
    $region11: #{tpu_custom_call.1} parent=1 // pred_check_branch
      %35 = sbr.rel (0) target = $region13
    $region12: #{tpu_custom_call.1} parent=1 // pred_region
      %36 = dma.done [#allocation3], 256
    $region13: #{tpu_custom_call.1} parent=1 // pred_fallthru
      _
    // Predicated region
    $region14: #{tpu_custom_call.1} parent=1 // pred_check
      _
    $region15: #{tpu_custom_call.1} parent=1 // pred_check_branch
      %38 = sbr.rel (0) target = $region17
    $region16: #{tpu_custom_call.1} parent=1 // pred_region
      %39 = dma.done [#allocation6], 256
    $region17: #{tpu_custom_call.1} parent=1 // pred_fallthru
      _
    %v40 = vld [vmem:[#allocation2] sm:$0xff]
    %v41 = vld [vmem:[#allocation2 + $0x8] sm:$0xff]
    %v42 = vld [vmem:[#allocation5] sm:$0xff]
    %v43 = vld [vmem:[#allocation5 + $0x8] sm:$0xff]
    %v44 = vadd.f32 %v40, %v42
    %v45 = vadd.f32 %v41, %v43
    %46 = vst [vmem:[#allocation7] sm:$0xff] %v44
    %47 = vst [vmem:[#allocation7 + $0x8] sm:$0xff] %v45
    // Predicated region
    $region18: #{tpu_custom_call.1} parent=1 // pred_check
      _
    $region19: #{tpu_custom_call.1} parent=1 // pred_check_branch
      %49 = sbr.rel (0) target = $region21
    $region20: #{tpu_custom_call.1} parent=1 // pred_region
      %s51 = ssub.s32 256, 256
      %52 = vsyncadd [#allocation4], %s51
      %s53 = sshll.u32 [#allocation7], 4
      %s54 = int_to_ptr.vmem [resolvable:$true] %s53
      %59 = dma.vmem_to_hbm [thread:$0]  %s54, 256, %s2, [#allocation4], 128, 128, 8
    $region21: #{tpu_custom_call.1} parent=1 // pred_fallthru
      _
    // Predicated region
    $region22: #{tpu_custom_call.1} parent=1 // pred_check
      _
    $region23: #{tpu_custom_call.1} parent=1 // pred_check_branch
      %61 = sbr.rel (0) target = $region25
    $region24: #{tpu_custom_call.1} parent=1 // pred_region
      %62 = dma.done [#allocation4], 256
    $region25: #{tpu_custom_call.1} parent=1 // pred_fallthru
      _
    %63 = vsyncpa [#allocation3], 1
    %64 = vsyncpa [#allocation6], 1
    %65 = vsyncpa [#allocation4], 1

</llo_original>
